<compile_context>
chip_gen: v7x
topology: tpu7x:2x2x1
jax: 0.10.0
libtpu: 0.0.40
codegen_flags: <defaults>
</compile_context>

<pallas_src>
import math
import functools

import jax
import jax.numpy as jnp
from jax import lax
from jax.experimental import pallas as pl
from jax.experimental.pallas import tpu as pltpu


# Tile budget chosen against the smallest VMEM generation (v7x: 64 MiB
# physical / 32 MiB scoped default); double-buffered inputs at 256 rows and
# these channel widths stay far below that on v5e/v6e/v7x.
DEFAULT_ROW_TILE = 256
VMEM_LIMIT_BYTES = 64 * 1024 * 1024


def _row_tiling(n, block_rows=DEFAULT_ROW_TILE):
    tn = min(block_rows, n)
    return tn, pl.cdiv(n, tn)


# ----------------------------- Pallas kernels ------------------------------

def _linear_kernel(x_ref, w_ref, b_ref, o_ref):
    o_ref[...] = (jnp.dot(x_ref[...], w_ref[...],
                          preferred_element_type=jnp.float32)
                  + b_ref[...]).astype(o_ref.dtype)


def linear_pallas(x, w, b, *, block_rows=DEFAULT_ROW_TILE):
    """x:(N,Cin) @ w:(Cin,Cout) + b -> (N,Cout), row-tiled with cdiv grid."""
    N, Cin = x.shape
    Cout = w.shape[1]
    tn, grid = _row_tiling(N, block_rows)
    return pl.pallas_call(
        _linear_kernel,
        out_shape=jax.ShapeDtypeStruct((N, Cout), jnp.float32),
        grid=(grid,),
        in_specs=[pl.BlockSpec((tn, Cin), lambda i: (i, 0)),
                  pl.BlockSpec((Cin, Cout), lambda i: (0, 0)),
                  pl.BlockSpec((1, Cout), lambda i: (0, 0))],
        out_specs=pl.BlockSpec((tn, Cout), lambda i: (i, 0)),
        compiler_params=pltpu.CompilerParams(
            dimension_semantics=("parallel",),
            vmem_limit_bytes=VMEM_LIMIT_BYTES),
    )(x.astype(jnp.float32), w.astype(jnp.float32),
      b.reshape(1, Cout).astype(jnp.float32))


def _linear_ln_elu_kernel(x_ref, w_ref, b_ref, g_ref, be_ref, o_ref, *, ln_eps):
    h = (jnp.dot(x_ref[...], w_ref[...], preferred_element_type=jnp.float32)
         + b_ref[...])
    mu = jnp.mean(h, axis=-1, keepdims=True)
    var = jnp.mean(jnp.square(h - mu), axis=-1, keepdims=True)
    h = (h - mu) * lax.rsqrt(var + ln_eps) * g_ref[...] + be_ref[...]
    # ELU(alpha=1); exp-based form (expm1 avoided for lowering safety).
    o_ref[...] = jnp.where(h > 0.0, h,
                           jnp.exp(jnp.minimum(h, 0.0)) - 1.0).astype(o_ref.dtype)


def linear_ln_elu_pallas(x, w, b, gamma, beta, *, block_rows=DEFAULT_ROW_TILE):
    """Fused fc_in + LayerNorm + ELU (one HBM round trip)."""
    N, Cin = x.shape
    Cout = w.shape[1]
    tn, grid = _row_tiling(N, block_rows)
    kern = functools.partial(_linear_ln_elu_kernel, ln_eps=1e-5)
    return pl.pallas_call(
        kern,
        out_shape=jax.ShapeDtypeStruct((N, Cout), jnp.float32),
        grid=(grid,),
        in_specs=[pl.BlockSpec((tn, Cin), lambda i: (i, 0)),
                  pl.BlockSpec((Cin, Cout), lambda i: (0, 0)),
                  pl.BlockSpec((1, Cout), lambda i: (0, 0)),
                  pl.BlockSpec((1, Cout), lambda i: (0, 0)),
                  pl.BlockSpec((1, Cout), lambda i: (0, 0))],
        out_specs=pl.BlockSpec((tn, Cout), lambda i: (i, 0)),
        compiler_params=pltpu.CompilerParams(
            dimension_semantics=("parallel",),
            vmem_limit_bytes=VMEM_LIMIT_BYTES),
    )(x.astype(jnp.float32), w.astype(jnp.float32),
      b.reshape(1, Cout).astype(jnp.float32),
      gamma.reshape(1, Cout).astype(jnp.float32),
      beta.reshape(1, Cout).astype(jnp.float32))


def _qkv_proj_kernel(x_ref, w_ref, b_ref, projt_ref, q_ref, kv_ref, kmax_ref, *,
                     hd, scale, n_rows, tile_rows):
    """Fused QKV projection + global key random-feature column max."""
    i = pl.program_id(0)
    qkv = (jnp.dot(x_ref[...], w_ref[...], preferred_element_type=jnp.float32)
           + b_ref[...])
    q_ref[...] = qkv[:, :hd]
    kv_ref[...] = qkv[:, hd:]

    ks = qkv[:, hd:2 * hd] * scale
    kdash = jnp.dot(ks, projt_ref[...], preferred_element_type=jnp.float32)
    # Mask padded rows of the last partial tile out of the max reduction.
    rows = lax.broadcasted_iota(jnp.int32, kdash.shape, 0)
    kdash = jnp.where(rows < (n_rows - i * tile_rows), kdash, -jnp.inf)

    @pl.when(i == 0)
    def _():
        kmax_ref[...] = jnp.full(kmax_ref.shape, -jnp.inf, dtype=kmax_ref.dtype)

    kmax_ref[...] = jnp.maximum(kmax_ref[...],
                                jnp.max(kdash, axis=0, keepdims=True))


def _kvs_kernel(kv_ref, g_ref, projt_ref, kmax_ref, kvs_ref, kg_ref, *,
                heads, head_dim, n_feat, n_gumbel, scale, ratio, eps,
                n_rows, tile_rows):
    """Phase 1: stream k/v/gumbel tiles, accumulate kvs & kg factors."""
    i = pl.program_id(0)
    H, D, M, K = heads, head_dim, n_feat, n_gumbel
    HD, HM = H * D, H * M

    @pl.when(i == 0)
    def _():
        kvs_ref[...] = jnp.zeros_like(kvs_ref)
        kg_ref[...] = jnp.zeros_like(kg_ref)

    ks = kv_ref[:, :HD] * scale                                     # (t, HD)
    v = kv_ref[:, HD:]                                              # (t, HD)
    kdash = jnp.dot(ks, projt_ref[...], preferred_element_type=jnp.float32)

    # Per-head sum of squares via a block-indicator matmul (stays lane-dense).
    sum_e = ((lax.broadcasted_iota(jnp.int32, (HD, H), 0) // D)
             == lax.broadcasted_iota(jnp.int32, (HD, H), 1)).astype(jnp.float32)
    diag_k = 0.5 * jnp.dot(ks * ks, sum_e, preferred_element_type=jnp.float32)

    # Global (per-head) key stabiliser from the column-max prepass.
    kmax_h = jnp.concatenate(
        [jnp.max(kmax_ref[:, h * M:(h + 1) * M], axis=-1, keepdims=True)
         for h in range(H)], axis=-1)                               # (1, H)

    expand_e = (lax.broadcasted_iota(jnp.int32, (H, HM), 0)
                == (lax.broadcasted_iota(jnp.int32, (H, HM), 1) // M)
                ).astype(jnp.float32)
    shift = jnp.dot(diag_k + kmax_h, expand_e,
                    preferred_element_type=jnp.float32)             # (t, HM)
    kp = ratio * (jnp.exp(kdash - shift) + eps)                     # (t, HM)

    # Zero padded rows of the last partial tile so they don't pollute the sums.
    rows = lax.broadcasted_iota(jnp.int32, kp.shape, 0)
    kp = jnp.where(rows < (n_rows - i * tile_rows), kp, 0.0)

    g_exp = jnp.exp(g_ref[...])                                     # (t, HK)
    # D-aligned (head, sample)-major numerator factor: (t, H*K*D).
    gv = jnp.concatenate(
        [g_exp[:, h * K + kk:h * K + kk + 1] * v[:, h * D:(h + 1) * D]
         for h in range(H) for kk in range(K)], axis=-1)

    # Contract over the node dimension directly (TN dims, no kp.T materialise).
    tn_dims = (((0,), (0,)), ((), ()))
    kvs_ref[...] += lax.dot_general(kp, gv, tn_dims,
                                    preferred_element_type=jnp.float32)
    kg_ref[...] += lax.dot_general(kp, g_exp, tn_dims,
                                   preferred_element_type=jnp.float32)

    # After the last tile, zero cross-head blocks so phase 2 stays head-batched.
    @pl.when(i == pl.num_programs(0) - 1)
    def _():
        r1 = lax.broadcasted_iota(jnp.int32, (HM, H * K * D), 0) // M
        c1 = lax.broadcasted_iota(jnp.int32, (HM, H * K * D), 1) // (K * D)
        kvs_ref[...] = kvs_ref[...] * (r1 == c1).astype(jnp.float32)
        r2 = lax.broadcasted_iota(jnp.int32, (HM, H * K), 0) // M
        c2 = lax.broadcasted_iota(jnp.int32, (HM, H * K), 1) // K
        kg_ref[...] = kg_ref[...] * (r2 == c2).astype(jnp.float32)


def _attn_out_kernel(q_ref, zres_ref, kvs_ref, kg_ref, projt_ref, wo_ref,
                     bo_ref, gam_ref, bet_ref, o_ref, *,
                     heads, head_dim, n_feat, n_gumbel, scale, ratio, eps,
                     ln_eps):
    """Phase 2: per q tile, attention + fused Wo + residual + LayerNorm."""
    H, D, M, K = heads, head_dim, n_feat, n_gumbel
    HD, HM = H * D, H * M

    qs = q_ref[...] * scale                                         # (t, HD)
    qdash = jnp.dot(qs, projt_ref[...], preferred_element_type=jnp.float32)

    sum_e = ((lax.broadcasted_iota(jnp.int32, (HD, H), 0) // D)
             == lax.broadcasted_iota(jnp.int32, (HD, H), 1)).astype(jnp.float32)
    diag_q = 0.5 * jnp.dot(qs * qs, sum_e, preferred_element_type=jnp.float32)

    rowmax = jnp.concatenate(
        [jnp.max(qdash[:, h * M:(h + 1) * M], axis=-1, keepdims=True)
         for h in range(H)], axis=-1)                               # (t, H)

    expand_e = (lax.broadcasted_iota(jnp.int32, (H, HM), 0)
                == (lax.broadcasted_iota(jnp.int32, (H, HM), 1) // M)
                ).astype(jnp.float32)
    shift = jnp.dot(diag_q + rowmax, expand_e,
                    preferred_element_type=jnp.float32)             # (t, HM)
    qp = ratio * (jnp.exp(qdash - shift) + eps)                     # (t, HM)

    num = jnp.dot(qp, kvs_ref[...], preferred_element_type=jnp.float32)  # (t, H*K*D)
    den = jnp.dot(qp, kg_ref[...], preferred_element_type=jnp.float32)   # (t, H*K)
    # TODO(synk): approx EUP reciprocal (~2^-12 rel err) will not bit-match the
    # PyTorch division; acceptable for inference.
    rec = pl.reciprocal(den, approx=True) * (1.0 / float(K))        # (t, H*K)

    head_outs = []
    for h in range(H):
        acc = jnp.zeros((qp.shape[0], D), jnp.float32)
        for kk in range(K):
            j = h * K + kk
            acc = acc + num[:, j * D:(j + 1) * D] * rec[:, j:j + 1]
        head_outs.append(acc)
    attn = jnp.concatenate(head_outs, axis=-1)                      # (t, HD)

    # Fused Wo projection + residual add + LayerNorm epilogue.
    out = (jnp.dot(attn, wo_ref[...], preferred_element_type=jnp.float32)
           + bo_ref[...])
    out = out + zres_ref[...]
    mu = jnp.mean(out, axis=-1, keepdims=True)
    var = jnp.mean(jnp.square(out - mu), axis=-1, keepdims=True)
    out = (out - mu) * lax.rsqrt(var + ln_eps) * gam_ref[...] + bet_ref[...]
    o_ref[...] = out.astype(o_ref.dtype)


# ------------------------- fused conv-layer wrapper -------------------------

def nodeformer_conv_pallas(z, gumbels, qkv_w, qkv_b, wo, bo, ln_g, ln_b, proj,
                           *, heads, head_dim, tau,
                           block_rows=DEFAULT_ROW_TILE):
    """One NodeFormerConv layer + residual + LayerNorm: (N, C) -> (N, C)."""
    N, C = z.shape
    H, D = heads, head_dim
    HD, M = H * D, proj.shape[0]
    HM = H * M
    K = gumbels.shape[-1] // heads
    HK = H * K
    data_normalizer = 1.0 / math.sqrt(math.sqrt(float(D)))
    scale = data_normalizer / math.sqrt(float(tau))
    ratio = 1.0 / math.sqrt(float(M))
    eps = 1e-6

    # Block-diagonal random-feature projection so one matmul covers all heads.
    projt_bd = jnp.kron(jnp.eye(H, dtype=jnp.float32),
                        jnp.transpose(proj).astype(jnp.float32))    # (HD, HM)

    tn, grid = _row_tiling(N, block_rows)
    zf = z.astype(jnp.float32)

    # ---- kernel 1: fused QKV projection + key random-feature column max ----
    qkv_kern = functools.partial(_qkv_proj_kernel, hd=HD, scale=scale,
                                 n_rows=N, tile_rows=tn)
    q, kv, kmax = pl.pallas_call(
        qkv_kern,
        out_shape=(jax.ShapeDtypeStruct((N, HD), jnp.float32),
                   jax.ShapeDtypeStruct((N, 2 * HD), jnp.float32),
                   jax.ShapeDtypeStruct((1, HM), jnp.float32)),
        grid=(grid,),
        in_specs=[pl.BlockSpec((tn, C), lambda i: (i, 0)),
                  pl.BlockSpec((C, 3 * HD), lambda i: (0, 0)),
                  pl.BlockSpec((1, 3 * HD), lambda i: (0, 0)),
                  pl.BlockSpec((HD, HM), lambda i: (0, 0))],
        out_specs=(pl.BlockSpec((tn, HD), lambda i: (i, 0)),
                   pl.BlockSpec((tn, 2 * HD), lambda i: (i, 0)),
                   pl.BlockSpec((1, HM), lambda i: (0, 0))),
        compiler_params=pltpu.CompilerParams(
            dimension_semantics=("arbitrary",),   # kmax accumulated over tiles
            vmem_limit_bytes=VMEM_LIMIT_BYTES),
    )(zf, qkv_w.astype(jnp.float32),
      qkv_b.reshape(1, 3 * HD).astype(jnp.float32), projt_bd)

    # ---- kernel 2 (phase 1): stream k/v/gumbel tiles, accumulate kvs & kg --
    kvs_kern = functools.partial(
        _kvs_kernel, heads=H, head_dim=D, n_feat=M, n_gumbel=K,
        scale=scale, ratio=ratio, eps=eps, n_rows=N, tile_rows=tn)
    kvs, kg = pl.pallas_call(
        kvs_kern,
        out_shape=(jax.ShapeDtypeStruct((HM, HK * D), jnp.float32),
                   jax.ShapeDtypeStruct((HM, HK), jnp.float32)),
        grid=(grid,),
        in_specs=[pl.BlockSpec((tn, 2 * HD), lambda i: (i, 0)),
                  pl.BlockSpec((tn, HK), lambda i: (i, 0)),
                  pl.BlockSpec((HD, HM), lambda i: (0, 0)),
                  pl.BlockSpec((1, HM), lambda i: (0, 0))],
        out_specs=(pl.BlockSpec((HM, HK * D), lambda i: (0, 0)),
                   pl.BlockSpec((HM, HK), lambda i: (0, 0))),
        compiler_params=pltpu.CompilerParams(
            dimension_semantics=("arbitrary",),
            vmem_limit_bytes=VMEM_LIMIT_BYTES),
    )(kv, gumbels.astype(jnp.float32), projt_bd, kmax)

    # ---- kernel 3 (phase 2): q tiles -> attention + Wo + residual + LN -----
    out_kern = functools.partial(
        _attn_out_kernel, heads=H, head_dim=D, n_feat=M, n_gumbel=K,
        scale=scale, ratio=ratio, eps=eps, ln_eps=1e-5)
    z_next = pl.pallas_call(
        out_kern,
        out_shape=jax.ShapeDtypeStruct((N, C), jnp.float32),
        grid=(grid,),
        in_specs=[pl.BlockSpec((tn, HD), lambda i: (i, 0)),
                  pl.BlockSpec((tn, C), lambda i: (i, 0)),
                  pl.BlockSpec((HM, HK * D), lambda i: (0, 0)),
                  pl.BlockSpec((HM, HK), lambda i: (0, 0)),
                  pl.BlockSpec((HD, HM), lambda i: (0, 0)),
                  pl.BlockSpec((HD, C), lambda i: (0, 0)),
                  pl.BlockSpec((1, C), lambda i: (0, 0)),
                  pl.BlockSpec((1, C), lambda i: (0, 0)),
                  pl.BlockSpec((1, C), lambda i: (0, 0))],
        out_specs=pl.BlockSpec((tn, C), lambda i: (i, 0)),
        compiler_params=pltpu.CompilerParams(
            dimension_semantics=("parallel",),    # megacore-split q tiles (v7x)
            vmem_limit_bytes=VMEM_LIMIT_BYTES),
    )(q, zf, kvs, kg, projt_bd, wo.astype(jnp.float32),
      bo.reshape(1, C).astype(jnp.float32),
      ln_g.reshape(1, C).astype(jnp.float32),
      ln_b.reshape(1, C).astype(jnp.float32))
    return z_next


# ------------------------------- JAX glue ----------------------------------

def create_projection_matrix(key, m, d):
    """Random-feature projection matrix (orthogonal blocks * chi norms)."""
    nb_full = m // d
    blocks = []
    for _ in range(nb_full):
        key, sub = jax.random.split(key)
        blk = jax.random.normal(sub, (d, d), dtype=jnp.float32)
        qm, _ = jnp.linalg.qr(blk)
        blocks.append(qm.T)
    rem = m - nb_full * d
    if rem > 0:
        key, sub = jax.random.split(key)
        blk = jax.random.normal(sub, (d, d), dtype=jnp.float32)
        qm, _ = jnp.linalg.qr(blk)
        blocks.append(qm.T[:rem])
    final = jnp.concatenate(blocks, axis=0)                      # (m, d)
    key, sub = jax.random.split(key)
    multiplier = jnp.linalg.norm(
        jax.random.normal(sub, (m, d), dtype=jnp.float32), axis=1)
    return multiplier[:, None] * final


def nodeformer_forward(params, x, user, item, tau, rng, *, heads, hidden,
                       nb_random_features, nb_gumbel):
    del user, item  # unused for graph_type='full' with rb_order=0
    # fc_in + LayerNorm + ELU fused into one row-tiled kernel (dropout p=0.0).
    z = linear_ln_elu_pallas(x, *params['fc_in'], *params['ln'][0])  # (N, hidden)
    N = z.shape[0]
    for li, p in enumerate(params['convs']):
        rng, pkey, gkey = jax.random.split(rng, 3)
        # TODO(synk): torch seeds the projection RNG with ceil(abs(sum(query)*1e8));
        # torch's RNG stream is not reproducible in JAX, so fresh JAX keys are used.
        proj = create_projection_matrix(pkey, nb_random_features, hidden)
        gumbels = (jax.random.gumbel(gkey, (N, heads, nb_gumbel),
                                     dtype=jnp.float32) / tau
                   ).reshape(N, heads * nb_gumbel)
        gamma, beta = params['ln'][li + 1]
        # Full conv layer + residual + LayerNorm, fused into 3 tiled kernels.
        z = nodeformer_conv_pallas(z, gumbels, *p['Wqkv'], *p['Wo'],
                                   gamma, beta, proj,
                                   heads=heads, head_dim=hidden, tau=tau)
    return linear_pallas(z, *params['fc_out'])                    # (N, out_ch)


# ------------------------- deterministic parameters -------------------------

def init_linear_params(key, fan_in, fan_out):
    kw, kb = jax.random.split(key)
    bound = 1.0 / math.sqrt(fan_in)
    w = jax.random.uniform(kw, (fan_in, fan_out), jnp.float32, -bound, bound)
    b = jax.random.uniform(kb, (fan_out,), jnp.float32, -bound, bound)
    return w, b


def init_params(key, in_ch, hidden, out_ch, heads, layers):
    params = {}
    key, k = jax.random.split(key)
    params['fc_in'] = init_linear_params(k, in_ch, hidden)
    params['ln'] = [(jnp.ones((hidden,), jnp.float32),
                     jnp.zeros((hidden,), jnp.float32))
                    for _ in range(layers + 1)]
    convs = []
    for _ in range(layers):
        key, kq, kk, kv, ko = jax.random.split(key, 5)
        wq, bq = init_linear_params(kq, hidden, hidden * heads)
        wk, bk = init_linear_params(kk, hidden, hidden * heads)
        wv, bv = init_linear_params(kv, hidden, hidden * heads)
        convs.append({
            # fused QKV: concatenate along Cout so one matmul covers q, k, v
            'Wqkv': (jnp.concatenate([wq, wk, wv], axis=1),
                     jnp.concatenate([bq, bk, bv], axis=0)),
            'Wo': init_linear_params(ko, hidden * heads, hidden),
        })
    params['convs'] = convs
    key, k = jax.random.split(key)
    params['fc_out'] = init_linear_params(k, hidden, out_ch)
    return params


# --------------------------------- main -------------------------------------

if __name__ == "__main__":
    N_USERS, N_ITEMS = 16, 16
    N = N_USERS + N_ITEMS
    IN_CH, HIDDEN, OUT_CH = 8, 16, 4
    HEADS, LAYERS = 2, 2
    NB_RANDOM_FEATURES = 8
    NB_GUMBEL = 4
    TAU = 1.0

    key = jax.random.PRNGKey(0)
    key, kparams, kx, kfwd = jax.random.split(key, 4)

    params = init_params(kparams, IN_CH, HIDDEN, OUT_CH, HEADS, LAYERS)
    x = jax.random.normal(kx, (N, IN_CH), dtype=jnp.float32)
    user = jnp.arange(N_USERS, dtype=jnp.int32)   # unused (graph_type='full')
    item = jnp.arange(N_ITEMS, dtype=jnp.int32)   # unused (graph_type='full')

    out = nodeformer_forward(params, x, user, item, TAU, kfwd,
                             heads=HEADS, hidden=HIDDEN,
                             nb_random_features=NB_RANDOM_FEATURES,
                             nb_gumbel=NB_GUMBEL)
    out = jax.block_until_ready(out)

    assert out.shape == (N, OUT_CH)
    assert bool(jnp.all(jnp.isfinite(out)))
    print("KERNEL_OK")
</pallas_src>

<mosaic_0001>
module attributes {stable_mosaic.version = 11 : i64} {
  func.func @_linear_ln_elu_kernel(%arg0: i32, %arg1: memref<32x8xf32, #tpu.memory_space<vmem>>, %arg2: memref<8x16xf32, #tpu.memory_space<vmem>>, %arg3: memref<1x16xf32, #tpu.memory_space<vmem>>, %arg4: memref<1x16xf32, #tpu.memory_space<vmem>>, %arg5: memref<1x16xf32, #tpu.memory_space<vmem>>, %arg6: memref<32x16xf32, #tpu.memory_space<vmem>>) attributes {dimension_semantics = [#tpu.dimension_semantics<parallel>], iteration_bounds = array<i64: 1>, scalar_prefetch = 0 : i64, scratch_operands = 0 : i64, tpu.core_type = #tpu.core_type<tc>, window_params = [{transform_indices = @transform_0, window_bounds = array<i64: 32, 8>}, {pipeline_mode = #tpu.pipeline_mode<synchronous>, transform_indices = @transform_1, window_bounds = array<i64: 8, 16>}, {pipeline_mode = #tpu.pipeline_mode<synchronous>, transform_indices = @transform_2, window_bounds = array<i64: 1, 16>}, {pipeline_mode = #tpu.pipeline_mode<synchronous>, transform_indices = @transform_3, window_bounds = array<i64: 1, 16>}, {pipeline_mode = #tpu.pipeline_mode<synchronous>, transform_indices = @transform_4, window_bounds = array<i64: 1, 16>}, {transform_indices = @transform_5, window_bounds = array<i64: 32, 16>}]} {
    %c0 = arith.constant 0 : index
    %c0_0 = arith.constant 0 : index
    %0 = vector.load %arg1[%c0, %c0_0] : memref<32x8xf32, #tpu.memory_space<vmem>>, vector<32x8xf32>
    %c0_1 = arith.constant 0 : index
    %c0_2 = arith.constant 0 : index
    %1 = vector.load %arg2[%c0_1, %c0_2] : memref<8x16xf32, #tpu.memory_space<vmem>>, vector<8x16xf32>
    %cst = arith.constant dense<0.000000e+00> : vector<32x16xf32>
    %2 = tpu.matmul %0, %1, %cst {dimension_numbers = #tpu.dot_dimension_numbers<[1], [0], [0], [1], [0, 0, 1, 1], [], []>} : vector<32x8xf32>, vector<8x16xf32>, vector<32x16xf32> -> vector<32x16xf32>
    %c0_3 = arith.constant 0 : index
    %c0_4 = arith.constant 0 : index
    %3 = vector.load %arg3[%c0_3, %c0_4] : memref<1x16xf32, #tpu.memory_space<vmem>>, vector<1x16xf32>
    %4 = vector.broadcast %3 : vector<1x16xf32> to vector<32x16xf32>
    %5 = arith.addf %2, %4 : vector<32x16xf32>
    %cst_5 = arith.constant dense<0.000000e+00> : vector<32xf32>
    %6 = vector.multi_reduction <add>, %5, %cst_5 [1] : vector<32x16xf32> to vector<32xf32>
    %7 = vector.shape_cast %6 : vector<32xf32> to vector<32x1xf32>
    %cst_6 = arith.constant 1.600000e+01 : f32
    %8 = vector.broadcast %cst_6 : f32 to vector<32x1xf32>
    %9 = arith.divf %7, %8 : vector<32x1xf32>
    %10 = vector.broadcast %9 : vector<32x1xf32> to vector<32x16xf32>
    %11 = arith.subf %5, %10 : vector<32x16xf32>
    %12 = arith.mulf %11, %11 : vector<32x16xf32>
    %cst_7 = arith.constant dense<0.000000e+00> : vector<32xf32>
    %13 = vector.multi_reduction <add>, %12, %cst_7 [1] : vector<32x16xf32> to vector<32xf32>
    %14 = vector.shape_cast %13 : vector<32xf32> to vector<32x1xf32>
    %cst_8 = arith.constant 1.600000e+01 : f32
    %15 = vector.broadcast %cst_8 : f32 to vector<32x1xf32>
    %16 = arith.divf %14, %15 : vector<32x1xf32>
    %17 = vector.broadcast %9 : vector<32x1xf32> to vector<32x16xf32>
    %18 = arith.subf %5, %17 : vector<32x16xf32>
    %cst_9 = arith.constant 9.99999974E-6 : f32
    %19 = vector.broadcast %cst_9 : f32 to vector<32x1xf32>
    %20 = arith.addf %16, %19 : vector<32x1xf32>
    %21 = math.rsqrt %20 : vector<32x1xf32>
    %22 = vector.broadcast %21 : vector<32x1xf32> to vector<32x16xf32>
    %23 = arith.mulf %18, %22 : vector<32x16xf32>
    %c0_10 = arith.constant 0 : index
    %c0_11 = arith.constant 0 : index
    %24 = vector.load %arg4[%c0_10, %c0_11] : memref<1x16xf32, #tpu.memory_space<vmem>>, vector<1x16xf32>
    %25 = vector.broadcast %24 : vector<1x16xf32> to vector<32x16xf32>
    %26 = arith.mulf %23, %25 : vector<32x16xf32>
    %c0_12 = arith.constant 0 : index
    %c0_13 = arith.constant 0 : index
    %27 = vector.load %arg5[%c0_12, %c0_13] : memref<1x16xf32, #tpu.memory_space<vmem>>, vector<1x16xf32>
    %28 = vector.broadcast %27 : vector<1x16xf32> to vector<32x16xf32>
    %29 = arith.addf %26, %28 : vector<32x16xf32>
    %cst_14 = arith.constant 0.000000e+00 : f32
    %30 = vector.broadcast %cst_14 : f32 to vector<32x16xf32>
    %31 = arith.cmpf ogt, %29, %30 : vector<32x16xf32>
    %cst_15 = arith.constant 0.000000e+00 : f32
    %32 = vector.broadcast %cst_15 : f32 to vector<32x16xf32>
    %33 = arith.minimumf %29, %32 : vector<32x16xf32>
    %34 = math.exp %33 : vector<32x16xf32>
    %cst_16 = arith.constant 1.000000e+00 : f32
    %35 = vector.broadcast %cst_16 : f32 to vector<32x16xf32>
    %36 = arith.subf %34, %35 : vector<32x16xf32>
    %37 = arith.select %31, %29, %36 : vector<32x16xi1>, vector<32x16xf32>
    %c0_17 = arith.constant 0 : index
    %c0_18 = arith.constant 0 : index
    %38 = vector.load %arg6[%c0_17, %c0_18] : memref<32x16xf32, #tpu.memory_space<vmem>>, vector<32x16xf32>
    tpu.vector_store %arg6[%c0_17, %c0_18], %37 {strides = array<i32>} : memref<32x16xf32, #tpu.memory_space<vmem>>, vector<32x16xf32>,
    return
  }
  func.func @transform_0(%arg0: i32) -> (i32, i32) {
    %c0_i32 = arith.constant 0 : i32
    %c0_i32_0 = arith.constant 0 : i32
    return %arg0, %c0_i32 : i32, i32
  }
  func.func @transform_1(%arg0: i32) -> (i32, i32) {
    %c0_i32 = arith.constant 0 : i32
    %c0_i32_0 = arith.constant 0 : i32
    %c0_i32_1 = arith.constant 0 : i32
    return %c0_i32, %c0_i32_0 : i32, i32
  }
  func.func @transform_2(%arg0: i32) -> (i32, i32) {
    %c0_i32 = arith.constant 0 : i32
    %c0_i32_0 = arith.constant 0 : i32
    %c0_i32_1 = arith.constant 0 : i32
    return %c0_i32, %c0_i32_0 : i32, i32
  }
  func.func @transform_3(%arg0: i32) -> (i32, i32) {
    %c0_i32 = arith.constant 0 : i32
    %c0_i32_0 = arith.constant 0 : i32
    %c0_i32_1 = arith.constant 0 : i32
    return %c0_i32, %c0_i32_0 : i32, i32
  }
  func.func @transform_4(%arg0: i32) -> (i32, i32) {
    %c0_i32 = arith.constant 0 : i32
    %c0_i32_0 = arith.constant 0 : i32
    %c0_i32_1 = arith.constant 0 : i32
    return %c0_i32, %c0_i32_0 : i32, i32
  }
  func.func @transform_5(%arg0: i32) -> (i32, i32) {
    %c0_i32 = arith.constant 0 : i32
    %c0_i32_0 = arith.constant 0 : i32
    return %arg0, %c0_i32 : i32, i32
  }
}

</mosaic_0001>

<llo_original>
// kernel: tpu_custom_call.1
$region0: #{tpu_custom_call.1}
  #allocation0 [shape = 'u32[]', space=smem, size = 0x4, offset = 0x4, fixed_abs, tag = 'smem constant byte address 0x4 - core index']
  #allocation1 [shape = 'u32[144,128]{1,0:T(1,128)}', space=vmem, size = 0x12000, scoped, tag = 'internal scratch']
  %s0 = inlined_call_operand.hbm [shape: f32[32,8], index: 0, kind: input, shape index: {}]
  %s1 = inlined_call_operand.hbm [shape: f32[8,16], index: 1, kind: input, shape index: {}]
  %s2 = inlined_call_operand.hbm [shape: f32[1,16], index: 2, kind: input, shape index: {}]
  %s3 = inlined_call_operand.hbm [shape: f32[1,16], index: 3, kind: input, shape index: {}]
  %s4 = inlined_call_operand.hbm [shape: f32[1,16], index: 4, kind: input, shape index: {}]
  %s5 = inlined_call_operand.hbm [shape: f32[32,16], index: 5, kind: output, shape index: {}]
  %s6 = sld [smem:[#allocation0]]
  $region50: #{tpu_custom_call.1} parent=0
    _
  %s8 = ssub.s32 1, %s6
  %s9 = scalar_select 0, %s8, %s6
  $region1: #{tpu_custom_call.1} parent=0
    #allocation2 [shape = 'u8[16384]{0}', space=vmem, size = 0x4000, scoped, tag = 'input window, operand 0, single buffered']
    #allocation3 [shape = 's32[1]{0}', space=sflag, size = 0x4, scoped, tag = 'scoped memory for tpu_custom_call.1']
    #allocation4 [shape = 's32[1]{0}', space=sflag, size = 0x4, scoped, tag = 'scoped memory for tpu_custom_call.1']
    #allocation5 [shape = 'u8[4096]{0}', space=vmem, size = 0x1000, scoped, tag = 'input window, operand 1, single buffered']
    #allocation6 [shape = 's32[1]{0}', space=sflag, size = 0x4, scoped, tag = 'scoped memory for tpu_custom_call.1']
    #allocation7 [shape = 'u8[512]{0}', space=vmem, size = 0x400, scoped, tag = 'input window, operand 2, single buffered']
    #allocation8 [shape = 'u8[512]{0}', space=vmem, size = 0x400, scoped, tag = 'input window, operand 3, single buffered']
    #allocation9 [shape = 's32[1]{0}', space=sflag, size = 0x4, scoped, tag = 'scoped memory for tpu_custom_call.1']
    #allocation10 [shape = 'u8[512]{0}', space=vmem, size = 0x400, scoped, tag = 'input window, operand 4, single buffered']
    #allocation11 [shape = 'u8[16384]{0}', space=vmem, size = 0x4000, scoped, tag = 'output window, operand 0, single buffered']
    %10 = vsyncpa [#allocation3], 0
    %11 = vsyncpa [#allocation6], 0
    %12 = vsyncpa [#allocation9], 0
    %13 = vsyncpa [#allocation4], 0
    // Predicated region
    $region2: #{tpu_custom_call.1} parent=1 // pred_check
      _
    $region3: #{tpu_custom_call.1} parent=1 // pred_check_branch
      %15 = sbr.rel (0) target = $region5
    $region4: #{tpu_custom_call.1} parent=1 // pred_region
      %s17 = ssub.s32 512, 512
      %18 = vsyncadd [#allocation3], %s17
      %s19 = sshll.u32 [#allocation2], 4
      %s20 = int_to_ptr.vmem [resolvable:$true] %s19
      %25 = dma.hbm_to_vmem [thread:$0]  %s0, 512, %s20, [#allocation3], 128, 128, 8
    $region5: #{tpu_custom_call.1} parent=1 // pred_fallthru
      _
    // Predicated region
    $region6: #{tpu_custom_call.1} parent=1 // pred_check
      _
    $region7: #{tpu_custom_call.1} parent=1 // pred_check_branch
      %27 = sbr.rel (0) target = $region9
    $region8: #{tpu_custom_call.1} parent=1 // pred_region
      %s29 = ssub.s32 128, 128
      %30 = vsyncadd [#allocation6], %s29
      %s32 = sshll.u32 [#allocation5], 4
      %s33 = int_to_ptr.vmem [resolvable:$true] %s32
      %35 = dma.hbm_to_vmem [thread:$0]  %s1, 128, %s33, [#allocation6]
    $region9: #{tpu_custom_call.1} parent=1 // pred_fallthru
      _
    // Predicated region
    $region10: #{tpu_custom_call.1} parent=1 // pred_check
      _
    $region11: #{tpu_custom_call.1} parent=1 // pred_check_branch
      %37 = sbr.rel (0) target = $region13
    $region12: #{tpu_custom_call.1} parent=1 // pred_region
      %s39 = ssub.s32 16, 16
      %40 = vsyncadd [#allocation6], %s39
      %s42 = sshll.u32 [#allocation7], 4
      %s43 = int_to_ptr.vmem [resolvable:$true] %s42
      %45 = dma.hbm_to_vmem [thread:$0]  %s2, 16, %s43, [#allocation6]
    $region13: #{tpu_custom_call.1} parent=1 // pred_fallthru
      _
    // Predicated region
    $region14: #{tpu_custom_call.1} parent=1 // pred_check
      _
    $region15: #{tpu_custom_call.1} parent=1 // pred_check_branch
      %47 = sbr.rel (0) target = $region17
    $region16: #{tpu_custom_call.1} parent=1 // pred_region
      %s49 = ssub.s32 16, 16
      %50 = vsyncadd [#allocation9], %s49
      %s52 = sshll.u32 [#allocation8], 4
      %s53 = int_to_ptr.vmem [resolvable:$true] %s52
      %55 = dma.hbm_to_vmem [thread:$0]  %s3, 16, %s53, [#allocation9]
    $region17: #{tpu_custom_call.1} parent=1 // pred_fallthru
      _
    // Predicated region
    $region18: #{tpu_custom_call.1} parent=1 // pred_check
      _
    $region19: #{tpu_custom_call.1} parent=1 // pred_check_branch
      %57 = sbr.rel (0) target = $region21
    $region20: #{tpu_custom_call.1} parent=1 // pred_region
      %s59 = ssub.s32 16, 16
      %60 = vsyncadd [#allocation9], %s59
      %s62 = sshll.u32 [#allocation10], 4
      %s63 = int_to_ptr.vmem [resolvable:$true] %s62
      %65 = dma.hbm_to_vmem [thread:$0]  %s4, 16, %s63, [#allocation9]
    $region21: #{tpu_custom_call.1} parent=1 // pred_fallthru
      _
    // Predicated region
    $region22: #{tpu_custom_call.1} parent=1 // pred_check
      _
    $region23: #{tpu_custom_call.1} parent=1 // pred_check_branch
      %67 = sbr.rel (0) target = $region25
    $region24: #{tpu_custom_call.1} parent=1 // pred_region
      %68 = dma.done [#allocation3], 512
    $region25: #{tpu_custom_call.1} parent=1 // pred_fallthru
      _
    // Predicated region
    $region26: #{tpu_custom_call.1} parent=1 // pred_check
      _
    $region27: #{tpu_custom_call.1} parent=1 // pred_check_branch
      %70 = sbr.rel (0) target = $region29
    $region28: #{tpu_custom_call.1} parent=1 // pred_region
      %71 = dma.done [#allocation6], 128
    $region29: #{tpu_custom_call.1} parent=1 // pred_fallthru
      _
    // Predicated region
    $region30: #{tpu_custom_call.1} parent=1 // pred_check
      _
    $region31: #{tpu_custom_call.1} parent=1 // pred_check_branch
      %73 = sbr.rel (0) target = $region33
    $region32: #{tpu_custom_call.1} parent=1 // pred_region
      %74 = dma.done [#allocation6], 16
    $region33: #{tpu_custom_call.1} parent=1 // pred_fallthru
      _
    // Predicated region
    $region34: #{tpu_custom_call.1} parent=1 // pred_check
      _
    $region35: #{tpu_custom_call.1} parent=1 // pred_check_branch
      %76 = sbr.rel (0) target = $region37
    $region36: #{tpu_custom_call.1} parent=1 // pred_region
      %77 = dma.done [#allocation9], 16
    $region37: #{tpu_custom_call.1} parent=1 // pred_fallthru
      _
    // Predicated region
    $region38: #{tpu_custom_call.1} parent=1 // pred_check
      _
    $region39: #{tpu_custom_call.1} parent=1 // pred_check_branch
      %79 = sbr.rel (0) target = $region41
    $region40: #{tpu_custom_call.1} parent=1 // pred_region
      %80 = dma.done [#allocation9], 16
    $region41: #{tpu_custom_call.1} parent=1 // pred_fallthru
      _
    %v81 = vld [vmem:[#allocation2] sm:$0xff]
    %v82 = vld [vmem:[#allocation2 + $0x8] sm:$0xff]
    %v83 = vld [vmem:[#allocation2 + $0x10] sm:$0xff]
    %v84 = vld [vmem:[#allocation2 + $0x18] sm:$0xff]
    %v85 = vld [vmem:[#allocation5] sm:$0xff]
    %v86 = vld [vmem:[#allocation7] sm:$0x1]
    %v88 = vlaneseq
    %v89 = vshrl.u32 %v88, 7
    %v90 = vsub.s32 0, %v89
    %v91 = vrot.slane %v86, %v90
    %vm93 = vcmask 64512
    %v95 = vsel %vm93, %v81, 0
    %v98 = vsel %vm93, %v82, 0
    %v101 = vsel %vm93, %v83, 0
    %v104 = vsel %vm93, %v84, 0
    %106 = vmatprep.subr.mxu0 0.0
    %107 = vmatpush1.msra.mxu0 %v85
    %108 = vmatprep.subr.mxu0 0.0
    %109 = vmatpush1.msra.mxu0 0.0
    %110 = vmatprep.subr.mxu0 0.0
    %111 = vmatpush1.msra.mxu0 0.0
    %112 = vmatprep.subr.mxu0 0.0
    %113 = vmatpush1.msra.mxu0 0.0
    %114 = vmatprep.subr.mxu0 0.0
    %115 = vmatpush1.msra.mxu0 0.0
    %116 = vmatprep.subr.mxu0 0.0
    %117 = vmatpush1.msra.mxu0 0.0
    %118 = vmatprep.subr.mxu0 0.0
    %119 = vmatpush1.msra.mxu0 0.0
    %120 = vmatprep.subr.mxu0 0.0
    %121 = vmatpush1.msra.mxu0 0.0
    %122 = vmatprep.subr.mxu0 0.0
    %123 = vmatpush1.msra.mxu0 0.0
    %124 = vmatprep.subr.mxu0 0.0
    %125 = vmatpush1.msra.mxu0 0.0
    %126 = vmatprep.subr.mxu0 0.0
    %127 = vmatpush1.msra.mxu0 0.0
    %128 = vmatprep.subr.mxu0 0.0
    %129 = vmatpush1.msra.mxu0 0.0
    %130 = vmatprep.subr.mxu0 0.0
    %131 = vmatpush1.msra.mxu0 0.0
    %132 = vmatprep.subr.mxu0 0.0
    %133 = vmatpush1.msra.mxu0 0.0
    %134 = vmatprep.subr.mxu0 0.0
    %135 = vmatpush1.msra.mxu0 0.0
    %136 = vmatprep.subr.mxu0 0.0
    %137 = vmatpush1.msra.mxu0 0.0
    %138 = vmatprep.subr.mxu0 0.0
    %139 = vmatpush1.msra.mxu0 0.0
    %140 = vmatprep.subr.mxu0 0.0
    %141 = vmatpush1.msra.mxu0 0.0
    %142 = vmatprep.subr.mxu0 0.0
    %143 = vmatpush1.msra.mxu0 0.0
    %144 = vmatprep.subr.mxu0 0.0
    %145 = vmatpush1.msra.mxu0 0.0
    %146 = vmatprep.subr.mxu0 0.0
    %147 = vmatpush1.msra.mxu0 0.0
    %148 = vmatprep.subr.mxu0 0.0
    %149 = vmatpush1.msra.mxu0 0.0
    %150 = vmatprep.subr.mxu0 0.0
    %151 = vmatpush1.msra.mxu0 0.0
    %152 = vmatprep.subr.mxu0 0.0
    %153 = vmatpush1.msra.mxu0 0.0
    %154 = vmatprep.subr.mxu0 0.0
    %155 = vmatpush1.msra.mxu0 0.0
    %156 = vmatprep.subr.mxu0 0.0
    %157 = vmatpush1.msra.mxu0 0.0
    %158 = vmatprep.subr.mxu0 0.0
    %159 = vmatpush1.msra.mxu0 0.0
    %160 = vmatprep.subr.mxu0 0.0
    %161 = vmatpush1.msra.mxu0 0.0
    %162 = vmatprep.subr.mxu0 0.0
    %163 = vmatpush1.msra.mxu0 0.0
    %164 = vmatprep.subr.mxu0 0.0
    %165 = vmatpush1.msra.mxu0 0.0
    %166 = vmatprep.subr.mxu0 0.0
    %167 = vmatpush1.msra.mxu0 0.0
    %168 = vmatprep.subr.mxu0 0.0
    %169 = vmatpush1.msra.mxu0 0.0
    %170 = vmatprep.mubr.f32.mxu0 0.0
    %171 = vmatmul.mubr.f32.gmra.mrb[0].mxu0 %v95
    %v172 = vpop.f32.mrb[0].mxu0
    %v173 = vadd.f32 %v91, %v172
    %v174 = vpop.f32.mrb[0].mxu0
    %175 = vmatprep.mubr.f32.mxu0 0.0
    %176 = vmatmul.mubr.f32.gmra.mrb[0].mxu0 %v98
    %v177 = vpop.f32.mrb[0].mxu0
    %v178 = vadd.f32 %v91, %v177
    %v179 = vpop.f32.mrb[0].mxu0
    %180 = vmatprep.mubr.f32.mxu0 0.0
    %181 = vmatmul.mubr.f32.gmra.mrb[0].mxu0 %v101
    %v182 = vpop.f32.mrb[0].mxu0
    %v183 = vadd.f32 %v91, %v182
    %v184 = vpop.f32.mrb[0].mxu0
    %185 = vmatprep.mubr.f32.mxu0 0.0
    %186 = vmatmul.mubr.f32.gmra.mrb[0].mxu0 %v104
    %v187 = vpop.f32.mrb[0].mxu0
    %v188 = vadd.f32 %v91, %v187
    %v189 = vpop.f32.mrb[0].mxu0
    %190 = vdwg.mxu0
    %vm191 = vcmask 130048
    %v192 = vsel %vm191, %v173, 0.0
    %193 = vadd.xlane.f32.xlu0 %v192
    %v194 = vpop.xlane.xlu0 %193
    %v195 = vsel %vm191, %v178, 0.0
    %196 = vadd.xlane.f32.xlu0 %v195
    %v197 = vpop.xlane.xlu0 %196
    %v198 = vsel %vm191, %v183, 0.0
    %199 = vadd.xlane.f32.xlu0 %v198
    %v200 = vpop.xlane.xlu0 %199
    %v201 = vsel %vm191, %v188, 0.0
    %202 = vadd.xlane.f32.xlu0 %v201
    %v203 = vpop.xlane.xlu0 %202
    %v204 = vrcp.pop 16.0
    %v205 = vmul.f32 %v194, %v204
    %v206 = vmul.f32 %v197, %v204
    %v207 = vmul.f32 %v200, %v204
    %v208 = vmul.f32 %v203, %v204
    %v209 = vsub.f32 %v173, %v205
    %v210 = vsub.f32 %v178, %v206
    %v211 = vsub.f32 %v183, %v207
    %v212 = vsub.f32 %v188, %v208
    %v213 = vmul.f32 %v209, %v209
    %v214 = vmul.f32 %v210, %v210
    %v215 = vmul.f32 %v211, %v211
    %v216 = vmul.f32 %v212, %v212
    %v217 = vsel %vm191, %v213, 0.0
    %218 = vadd.xlane.f32.xlu0 %v217
    %v219 = vpop.xlane.xlu0 %218
    %v220 = vsel %vm191, %v214, 0.0
    %221 = vadd.xlane.f32.xlu0 %v220
    %v222 = vpop.xlane.xlu0 %221
    %v223 = vsel %vm191, %v215, 0.0
    %224 = vadd.xlane.f32.xlu0 %v223
    %v225 = vpop.xlane.xlu0 %224
    %v226 = vsel %vm191, %v216, 0.0
    %227 = vadd.xlane.f32.xlu0 %v226
    %v228 = vpop.xlane.xlu0 %227
    %v229 = vmul.f32 %v219, %v204
    %v230 = vmul.f32 %v222, %v204
    %v231 = vmul.f32 %v225, %v204
    %v232 = vmul.f32 %v228, %v204
    %v233 = vadd.f32 %v229, 1e-05
    %v234 = vadd.f32 %v230, 1e-05
    %v235 = vadd.f32 %v231, 1e-05
    %v236 = vadd.f32 %v232, 1e-05
    %v237 = vrsqrt.pop %v233
    %v238 = vrsqrt.pop %v234
    %v239 = vrsqrt.pop %v235
    %v240 = vrsqrt.pop %v236
    %v241 = vmul.f32 %v209, %v237
    %v242 = vmul.f32 %v210, %v238
    %v243 = vmul.f32 %v211, %v239
    %v244 = vmul.f32 %v212, %v240
    %v245 = vld [vmem:[#allocation8] sm:$0x1]
    %v247 = vlaneseq
    %v248 = vshrl.u32 %v247, 7
    %v249 = vsub.s32 0, %v248
    %v250 = vrot.slane %v245, %v249
    %v252 = vmul.f32 %v241, %v250
    %v253 = vmul.f32 %v242, %v250
    %v254 = vmul.f32 %v243, %v250
    %v255 = vmul.f32 %v244, %v250
    %v256 = vld [vmem:[#allocation10] sm:$0x1]
    %v258 = vlaneseq
    %v259 = vshrl.u32 %v258, 7
    %v260 = vsub.s32 0, %v259
    %v261 = vrot.slane %v256, %v260
    %v263 = vadd.f32 %v252, %v261
    %v264 = vadd.f32 %v253, %v261
    %v265 = vadd.f32 %v254, %v261
    %v266 = vadd.f32 %v255, %v261
    %vm267 = vcmp.gt.f32.partialorder %v263, 0.0
    %vm268 = vcmp.gt.f32.partialorder %v264, 0.0
    %vm269 = vcmp.gt.f32.partialorder %v265, 0.0
    %vm270 = vcmp.gt.f32.partialorder %v266, 0.0
    %v271 = vmin.f32 %v263, 0.0
    %v272 = vmin.f32 %v264, 0.0
    %v273 = vmin.f32 %v265, 0.0
    %v274 = vmin.f32 %v266, 0.0
    %v275 = vmul.f32 %v271, 1.442695
    %v276 = vpow.pop %v275
    %v277 = vmul.f32 %v272, 1.442695
    %v278 = vpow.pop %v277
    %v279 = vmul.f32 %v273, 1.442695
    %v280 = vpow.pop %v279
    %v281 = vmul.f32 %v274, 1.442695
    %v282 = vpow.pop %v281
    %v283 = vsub.f32 %v276, 1.0
    %v284 = vsub.f32 %v278, 1.0
    %v285 = vsub.f32 %v280, 1.0
    %v286 = vsub.f32 %v282, 1.0
    %v287 = vsel %vm267, %v263, %v283
    %v288 = vsel %vm268, %v264, %v284
    %v289 = vsel %vm269, %v265, %v285
    %v290 = vsel %vm270, %v266, %v286
    %291 = vst.msk [vmem:[#allocation11] sm:$0xff] %vm191, %v287
    %292 = vst.msk [vmem:[#allocation11 + $0x8] sm:$0xff] %vm191, %v288
    %293 = vst.msk [vmem:[#allocation11 + $0x10] sm:$0xff] %vm191, %v289
    %294 = vst.msk [vmem:[#allocation11 + $0x18] sm:$0xff] %vm191, %v290
    // Predicated region
    $region42: #{tpu_custom_call.1} parent=1 // pred_check
      _
    $region43: #{tpu_custom_call.1} parent=1 // pred_check_branch
      %296 = sbr.rel (0) target = $region45
    $region44: #{tpu_custom_call.1} parent=1 // pred_region
      %s298 = ssub.s32 512, 512
      %299 = vsyncadd [#allocation4], %s298
      %s300 = sshll.u32 [#allocation11], 4
      %s301 = int_to_ptr.vmem [resolvable:$true] %s300
      %306 = dma.vmem_to_hbm [thread:$0]  %s301, 512, %s5, [#allocation4], 128, 128, 8
    $region45: #{tpu_custom_call.1} parent=1 // pred_fallthru
      _
    // Predicated region
    $region46: #{tpu_custom_call.1} parent=1 // pred_check
      _
    $region47: #{tpu_custom_call.1} parent=1 // pred_check_branch
      %308 = sbr.rel (0) target = $region49
    $region48: #{tpu_custom_call.1} parent=1 // pred_region
      %309 = dma.done [#allocation4], 512
    $region49: #{tpu_custom_call.1} parent=1 // pred_fallthru
      _
    %310 = vsyncpa [#allocation3], 1
    %311 = vsyncpa [#allocation6], 1
    %312 = vsyncpa [#allocation9], 1
    %313 = vsyncpa [#allocation4], 1

</llo_original>
